<compile_context>
chip_gen: v7x
topology: tpu7x:2x2x1
jax: 0.10.0
libtpu: 0.0.40
codegen_flags: <defaults>
</compile_context>

<pallas_src>
import functools
import re

import jax
import jax.numpy as jnp
import numpy as np
from jax import lax
from jax.experimental import pallas as pl
from jax.experimental.pallas import tpu as pltpu


_COMPATIBILITY = {
    'metal': ['3d', 'realistic'],
    'glass': ['3d', 'realistic'],
    'wood': ['flat', 'realistic', 'hand drawn'],
    'crystal': ['3d', 'realistic'],
    'stone': ['flat', 'realistic'],
    'fabric': ['flat', 'hand drawn', 'realistic'],
}


def _create_compatibility_labels(material_types, style_types):
    """Host-side port of _create_compatibility_labels (regex/dict on strings)."""
    # TODO(synk): string regex / dict lookups have no Pallas equivalent; the
    # dense float label matrix produced here is what the TPU kernel consumes.
    b = len(material_types)
    labels = np.zeros((b, b), dtype=np.float32)
    for i, mat in enumerate(material_types):
        for j, style in enumerate(style_types):
            try:
                mat_name = re.match(r'([^(]+)', mat).group(1).strip()
                if mat_name in _COMPATIBILITY and style in _COMPATIBILITY[mat_name]:
                    labels[i, j] = 1.0
            except (AttributeError, TypeError):
                continue
    row_sums = labels.sum(axis=1, keepdims=True)
    labels = labels / (row_sums + 1e-6)
    return jnp.asarray(labels)


def _interaction_loss_kernel(style_ref, mat_ref, lab_ref, out_ref, acc_ref,
                             *, inv_temp, batch):
    i = pl.program_id(0)

    @pl.when(i == 0)
    def _():
        acc_ref[0] = jnp.float32(0.0)

    # Logits on the MXU: contract the feature axis of both operands so the
    # resident material tile is never explicitly transposed. f32 accumulation;
    # temperature folded in as a single scalar multiply on the f32 result.
    sim = lax.dot_general(
        style_ref[...], mat_ref[...],
        dimension_numbers=(((1,), (1,)), ((), ())),
        preferred_element_type=jnp.float32,
    ) * jnp.float32(inv_temp)                                              # [TB, B]

    # Numerically stable log-softmax over dim 1 (keepdims -> stay 2-D).
    m = jnp.max(sim, axis=1, keepdims=True)                                # [TB, 1]
    lse = m + jnp.log(jnp.sum(jnp.exp(sim - m), axis=1, keepdims=True))    # [TB, 1]
    logp = sim - lse                                                       # [TB, B]

    # Soft-target cross-entropy partial sum for this row tile.
    lab = lab_ref[...].astype(jnp.float32)                                 # [TB, B]
    acc_ref[0] += -jnp.sum(lab * logp)

    @pl.when(i == pl.num_programs(0) - 1)
    def _():
        out_ref[0, 0] = acc_ref[0] * jnp.float32(1.0 / batch)


def style_material_interaction_loss(style_emb, material_emb, labels,
                                    *, temperature=0.07, tile_b=None):
    b, d = style_emb.shape
    assert material_emb.shape == (b, d)
    # Mirror the forward's defensive slicing of the label matrix.
    labels = labels[:b, :b]
    assert labels.shape == (b, b)

    # Row-tile over style_emb/labels; material_emb stays resident.
    if tile_b is None:
        tile_b = b if b <= 512 else 512
    if b % tile_b != 0 or (tile_b % 8 != 0 and tile_b != b):
        tile_b = b  # TODO(synk): pad/mask for B not divisible by the tile size.
    grid = (b // tile_b,)

    kernel = functools.partial(
        _interaction_loss_kernel,
        inv_temp=float(1.0 / temperature),
        batch=int(b),
    )

    itemsize = jnp.dtype(style_emb.dtype).itemsize
    cost = pl.CostEstimate(
        flops=2 * b * b * d + 6 * b * b,
        transcendentals=b * b + b,
        bytes_accessed=(2 * b * d) * itemsize + b * b * 4 + 4,
    )

    out = pl.pallas_call(
        kernel,
        out_shape=jax.ShapeDtypeStruct((1, 1), jnp.float32),
        grid=grid,
        in_specs=[
            pl.BlockSpec((tile_b, d), lambda i: (i, 0)),   # style rows (streamed)
            pl.BlockSpec((b, d), lambda i: (0, 0)),        # material (resident)
            pl.BlockSpec((tile_b, b), lambda i: (i, 0)),   # label rows (streamed)
        ],
        out_specs=pl.BlockSpec((1, 1), lambda i: (0, 0),
                               memory_space=pltpu.MemorySpace.SMEM),
        scratch_shapes=[pltpu.SMEM((1,), jnp.float32)],
        compiler_params=pltpu.CompilerParams(
            dimension_semantics=("arbitrary",)),
        cost_estimate=cost,
    )(style_emb, material_emb, labels)
    return out[0, 0]


def _reference(style_emb, material_emb, labels, temperature=0.07):
    sim = (style_emb.astype(jnp.float32)
           @ material_emb.astype(jnp.float32).T) / temperature
    logp = jax.nn.log_softmax(sim, axis=1)
    return jnp.mean(-jnp.sum(labels.astype(jnp.float32) * logp, axis=1))


if __name__ == "__main__":
    key = jax.random.PRNGKey(0)
    k1, k2 = jax.random.split(key)
    B, D = 8, 32
    style_emb = jax.random.normal(k1, (B, D), dtype=jnp.float32)
    material_emb = jax.random.normal(k2, (B, D), dtype=jnp.float32)
    material_type = ['metal (brushed)', 'glass', 'wood', 'crystal',
                     'stone', 'fabric', 'metal', 'wood (oak)']
    style_type = ['3d', 'realistic', 'flat', 'hand drawn',
                  'realistic', '3d', 'flat', 'realistic']

    labels = _create_compatibility_labels(material_type, style_type)

    loss = style_material_interaction_loss(
        style_emb, material_emb, labels, temperature=0.07)
    loss = jax.block_until_ready(loss)

    ref = jax.block_until_ready(_reference(style_emb, material_emb, labels, 0.07))
    assert jnp.allclose(loss, ref, rtol=1e-5, atol=1e-5), (loss, ref)

    print("KERNEL_OK")
</pallas_src>

<mosaic_0001>
module attributes {stable_mosaic.version = 11 : i64} {
  func.func @_interaction_loss_kernel(%arg0: i32, %arg1: memref<8x32xf32, #tpu.memory_space<vmem>>, %arg2: memref<8x32xf32, #tpu.memory_space<vmem>>, %arg3: memref<8x8xf32, #tpu.memory_space<vmem>>, %arg4: memref<1x1xf32, #tpu.memory_space<smem>>, %arg5: memref<1xf32, #tpu.memory_space<smem>>) attributes {dimension_semantics = [#tpu.dimension_semantics<arbitrary>], iteration_bounds = array<i64: 1>, scalar_prefetch = 0 : i64, scratch_operands = 1 : i64, tpu.core_type = #tpu.core_type<tc>, window_params = [{transform_indices = @transform_0, window_bounds = array<i64: 8, 32>}, {pipeline_mode = #tpu.pipeline_mode<synchronous>, transform_indices = @transform_1, window_bounds = array<i64: 8, 32>}, {transform_indices = @transform_2, window_bounds = array<i64: 8, 8>}, {transform_indices = @transform_3, window_bounds = array<i64: 1, 1>}]} {
    %c0_i32 = arith.constant 0 : i32
    %0 = arith.cmpi eq, %arg0, %c0_i32 : i32
    %1 = arith.extui %0 : i1 to i32
    %c0_i32_0 = arith.constant 0 : i32
    %2 = arith.cmpi ne, %1, %c0_i32_0 : i32
    scf.if %2 {
      %cst_15 = arith.constant 0.000000e+00 : f32
      %c0_16 = arith.constant 0 : index
      %32 = memref.load %arg5[%c0_16] : memref<1xf32, #tpu.memory_space<smem>>
      memref.store %cst_15, %arg5[%c0_16] : memref<1xf32, #tpu.memory_space<smem>>
    } else {
    }
    %c0 = arith.constant 0 : index
    %c0_1 = arith.constant 0 : index
    %3 = vector.load %arg1[%c0, %c0_1] : memref<8x32xf32, #tpu.memory_space<vmem>>, vector<8x32xf32>
    %c0_2 = arith.constant 0 : index
    %c0_3 = arith.constant 0 : index
    %4 = vector.load %arg2[%c0_2, %c0_3] : memref<8x32xf32, #tpu.memory_space<vmem>>, vector<8x32xf32>
    %cst = arith.constant dense<0.000000e+00> : vector<8x8xf32>
    %5 = tpu.matmul %3, %4, %cst {dimension_numbers = #tpu.dot_dimension_numbers<[1], [1], [0], [0], [0, 0, 1, 0], [], []>} : vector<8x32xf32>, vector<8x32xf32>, vector<8x8xf32> -> vector<8x8xf32>
    %cst_4 = arith.constant 14.2857141 : f32
    %6 = vector.broadcast %cst_4 : f32 to vector<8x8xf32>
    %7 = arith.mulf %5, %6 : vector<8x8xf32>
    %cst_5 = arith.constant dense<0xFF800000> : vector<8xf32>
    %8 = vector.multi_reduction <maximumf>, %7, %cst_5 [1] : vector<8x8xf32> to vector<8xf32>
    %9 = vector.shape_cast %8 : vector<8xf32> to vector<8x1xf32>
    %10 = vector.broadcast %9 : vector<8x1xf32> to vector<8x8xf32>
    %11 = arith.subf %7, %10 : vector<8x8xf32>
    %12 = math.exp %11 : vector<8x8xf32>
    %cst_6 = arith.constant dense<0.000000e+00> : vector<8xf32>
    %13 = vector.multi_reduction <add>, %12, %cst_6 [1] : vector<8x8xf32> to vector<8xf32>
    %14 = vector.shape_cast %13 : vector<8xf32> to vector<8x1xf32>
    %15 = math.log %14 : vector<8x1xf32>
    %16 = arith.addf %9, %15 : vector<8x1xf32>
    %17 = vector.broadcast %16 : vector<8x1xf32> to vector<8x8xf32>
    %18 = arith.subf %7, %17 : vector<8x8xf32>
    %c0_7 = arith.constant 0 : index
    %c0_8 = arith.constant 0 : index
    %19 = vector.load %arg3[%c0_7, %c0_8] : memref<8x8xf32, #tpu.memory_space<vmem>>, vector<8x8xf32>
    %c0_9 = arith.constant 0 : index
    %20 = memref.load %arg5[%c0_9] : memref<1xf32, #tpu.memory_space<smem>>
    %21 = arith.mulf %19, %18 : vector<8x8xf32>
    %22 = vector.shape_cast %21 : vector<8x8xf32> to vector<1x8x8xf32>
    %cst_10 = arith.constant dense<0.000000e+00> : vector<1xf32>
    %23 = vector.multi_reduction <add>, %22, %cst_10 [1, 2] : vector<1x8x8xf32> to vector<1xf32>
    %24 = vector.shape_cast %23 : vector<1xf32> to vector<1x1x1xf32>
    %25 = vector.extract %24[0, 0, 0] : f32 from vector<1x1x1xf32>
    %cst_11 = arith.constant 0.000000e+00 : f32
    %26 = arith.subf %cst_11, %25 : f32
    %27 = arith.addf %20, %26 : f32
    %c0_12 = arith.constant 0 : index
    %28 = memref.load %arg5[%c0_12] : memref<1xf32, #tpu.memory_space<smem>>
    memref.store %27, %arg5[%c0_12] : memref<1xf32, #tpu.memory_space<smem>>
    %c0_i32_13 = arith.constant 0 : i32
    %29 = arith.cmpi eq, %arg0, %c0_i32_13 : i32
    %30 = arith.extui %29 : i1 to i32
    %c0_i32_14 = arith.constant 0 : i32
    %31 = arith.cmpi ne, %30, %c0_i32_14 : i32
    scf.if %31 {
      %c0_15 = arith.constant 0 : index
      %32 = memref.load %arg5[%c0_15] : memref<1xf32, #tpu.memory_space<smem>>
      %cst_16 = arith.constant 1.250000e-01 : f32
      %33 = arith.mulf %32, %cst_16 : f32
      %c0_17 = arith.constant 0 : index
      %c0_18 = arith.constant 0 : index
      %34 = memref.load %arg4[%c0_17, %c0_18] : memref<1x1xf32, #tpu.memory_space<smem>>
      memref.store %33, %arg4[%c0_17, %c0_18] : memref<1x1xf32, #tpu.memory_space<smem>>
    } else {
    }
    return
  }
  func.func @transform_0(%arg0: i32) -> (i32, i32) {
    %c0_i32 = arith.constant 0 : i32
    %c0_i32_0 = arith.constant 0 : i32
    return %arg0, %c0_i32 : i32, i32
  }
  func.func @transform_1(%arg0: i32) -> (i32, i32) {
    %c0_i32 = arith.constant 0 : i32
    %c0_i32_0 = arith.constant 0 : i32
    %c0_i32_1 = arith.constant 0 : i32
    return %c0_i32, %c0_i32_0 : i32, i32
  }
  func.func @transform_2(%arg0: i32) -> (i32, i32) {
    %c0_i32 = arith.constant 0 : i32
    %c0_i32_0 = arith.constant 0 : i32
    return %arg0, %c0_i32 : i32, i32
  }
  func.func @transform_3(%arg0: i32) -> (i32, i32) {
    %c0_i32 = arith.constant 0 : i32
    %c0_i32_0 = arith.constant 0 : i32
    %c0_i32_1 = arith.constant 0 : i32
    return %c0_i32, %c0_i32_0 : i32, i32
  }
}

</mosaic_0001>

<llo_original>
// kernel: tpu_custom_call.1
$region0: #{tpu_custom_call.1}
  #allocation0 [shape = 'u32[]', space=smem, size = 0x4, offset = 0x4, fixed_abs, tag = 'smem constant byte address 0x4 - core index']
  #allocation1 [shape = 'u32[144,128]{1,0:T(1,128)}', space=vmem, size = 0x12000, scoped, tag = 'internal scratch']
  #allocation2 [shape = 'f32[1]{0:T(128)}', space=smem, size = 0x200, scoped, tag = 'scratch operand']
  %s0 = inlined_call_operand.hbm [shape: f32[8,32], index: 0, kind: input, shape index: {}]
  %s1 = inlined_call_operand.hbm [shape: f32[8,32], index: 1, kind: input, shape index: {}]
  %s2 = inlined_call_operand.hbm [shape: f32[8,8], index: 2, kind: input, shape index: {}]
  %s3 = inlined_call_operand.hbm [shape: f32[1,1], index: 3, kind: output, shape index: {}]
  %s4 = sld [smem:[#allocation0]]
  $region42: #{tpu_custom_call.1} parent=0
    _
  %s6 = ssub.s32 1, %s4
  %s7 = scalar_select 0, %s6, %s4
  $region1: #{tpu_custom_call.1} parent=0
    #allocation3 [shape = 'u8[4096]{0}', space=vmem, size = 0x1000, scoped, tag = 'input window, operand 0, single buffered']
    #allocation4 [shape = 's32[1]{0}', space=sflag, size = 0x4, scoped, tag = 'scoped memory for tpu_custom_call.1']
    #allocation5 [shape = 's32[1]{0}', space=sflag, size = 0x4, scoped, tag = 'scoped memory for tpu_custom_call.1']
    #allocation6 [shape = 'u8[4096]{0}', space=vmem, size = 0x1000, scoped, tag = 'input window, operand 1, single buffered']
    #allocation7 [shape = 's32[1]{0}', space=sflag, size = 0x4, scoped, tag = 'scoped memory for tpu_custom_call.1']
    #allocation8 [shape = 'u8[4096]{0}', space=vmem, size = 0x1000, scoped, tag = 'input window, operand 2, single buffered']
    #allocation9 [shape = 'u8[512]{0}', space=smem, size = 0x200, scoped, tag = 'output window, operand 0, single buffered']
    %8 = vsyncpa [#allocation4], 0
    %9 = vsyncpa [#allocation7], 0
    %10 = vsyncpa [#allocation5], 0
    // Predicated region
    $region2: #{tpu_custom_call.1} parent=1 // pred_check
      _
    $region3: #{tpu_custom_call.1} parent=1 // pred_check_branch
      %12 = sbr.rel (0) target = $region5
    $region4: #{tpu_custom_call.1} parent=1 // pred_region
      %s14 = ssub.s32 128, 128
      %15 = vsyncadd [#allocation4], %s14
      %s17 = sshll.u32 [#allocation3], 4
      %s18 = int_to_ptr.vmem [resolvable:$true] %s17
      %20 = dma.hbm_to_vmem [thread:$0]  %s0, 128, %s18, [#allocation4]
    $region5: #{tpu_custom_call.1} parent=1 // pred_fallthru
      _
    // Predicated region
    $region6: #{tpu_custom_call.1} parent=1 // pred_check
      _
    $region7: #{tpu_custom_call.1} parent=1 // pred_check_branch
      %22 = sbr.rel (0) target = $region9
    $region8: #{tpu_custom_call.1} parent=1 // pred_region
      %s24 = ssub.s32 128, 128
      %25 = vsyncadd [#allocation7], %s24
      %s27 = sshll.u32 [#allocation6], 4
      %s28 = int_to_ptr.vmem [resolvable:$true] %s27
      %30 = dma.hbm_to_vmem [thread:$0]  %s1, 128, %s28, [#allocation7]
    $region9: #{tpu_custom_call.1} parent=1 // pred_fallthru
      _
    // Predicated region
    $region10: #{tpu_custom_call.1} parent=1 // pred_check
      _
    $region11: #{tpu_custom_call.1} parent=1 // pred_check_branch
      %32 = sbr.rel (0) target = $region13
    $region12: #{tpu_custom_call.1} parent=1 // pred_region
      %s34 = ssub.s32 128, 128
      %35 = vsyncadd [#allocation7], %s34
      %s37 = sshll.u32 [#allocation8], 4
      %s38 = int_to_ptr.vmem [resolvable:$true] %s37
      %40 = dma.hbm_to_vmem [thread:$0]  %s2, 128, %s38, [#allocation7]
    $region13: #{tpu_custom_call.1} parent=1 // pred_fallthru
      _
    // Predicated region
    $region14: #{tpu_custom_call.1} parent=1 // pred_check
      _
    $region15: #{tpu_custom_call.1} parent=1 // pred_check_branch
      %42 = sbr.rel (0) target = $region17
    $region16: #{tpu_custom_call.1} parent=1 // pred_region
      %43 = dma.done [#allocation4], 128
    $region17: #{tpu_custom_call.1} parent=1 // pred_fallthru
      _
    // Predicated region
    $region18: #{tpu_custom_call.1} parent=1 // pred_check
      _
    $region19: #{tpu_custom_call.1} parent=1 // pred_check_branch
      %45 = sbr.rel (0) target = $region21
    $region20: #{tpu_custom_call.1} parent=1 // pred_region
      %46 = dma.done [#allocation7], 128
    $region21: #{tpu_custom_call.1} parent=1 // pred_fallthru
      _
    // Predicated region
    $region22: #{tpu_custom_call.1} parent=1 // pred_check
      _
    $region23: #{tpu_custom_call.1} parent=1 // pred_check_branch
      %48 = sbr.rel (0) target = $region25
    $region24: #{tpu_custom_call.1} parent=1 // pred_region
      %49 = dma.done [#allocation7], 128
    $region25: #{tpu_custom_call.1} parent=1 // pred_fallthru
      _
    %p50 = scmp.eq.s32.totalorder 0, 0
    // Predicated region
    $region26: #{tpu_custom_call.1} parent=1 // pred_check
      %p51 = pneg %p50
    $region27: #{tpu_custom_call.1} parent=1 // pred_check_branch
      %53 = sbr.rel (%p51) target = $region29
    $region28: #{tpu_custom_call.1} parent=1 // pred_region
      %s54 = scalar_lea.smem [#allocation2], 0
      %55 = sst [smem:[%s54]] 0.0
    $region29: #{tpu_custom_call.1} parent=1 // pred_fallthru
      _
    %v56 = vld [vmem:[#allocation3] sm:$0xff]
    %v57 = vld [vmem:[#allocation6] sm:$0xff]
    %vm58 = vcmask 261120
    %v60 = vsel %vm58, %v56, 0
    %v63 = vsel %vm58, %v57, 0
    %65 = vmatprep.subr.mxu0 0.0
    %66 = vmatpush1.xpose.msra.mxu0 %v63
    %67 = vmatprep.subr.mxu0 0.0
    %68 = vmatpush1.xpose.msra.mxu0 0.0
    %69 = vmatprep.subr.mxu0 0.0
    %70 = vmatpush1.xpose.msra.mxu0 0.0
    %71 = vmatprep.subr.mxu0 0.0
    %72 = vmatpush1.xpose.msra.mxu0 0.0
    %73 = vmatprep.subr.mxu0 0.0
    %74 = vmatpush1.xpose.msra.mxu0 0.0
    %75 = vmatprep.subr.mxu0 0.0
    %76 = vmatpush1.xpose.msra.mxu0 0.0
    %77 = vmatprep.subr.mxu0 0.0
    %78 = vmatpush1.xpose.msra.mxu0 0.0
    %79 = vmatprep.subr.mxu0 0.0
    %80 = vmatpush1.xpose.msra.mxu0 0.0
    %81 = vmatprep.subr.mxu0 0.0
    %82 = vmatpush1.xpose.msra.mxu0 0.0
    %83 = vmatprep.subr.mxu0 0.0
    %84 = vmatpush1.xpose.msra.mxu0 0.0
    %85 = vmatprep.subr.mxu0 0.0
    %86 = vmatpush1.xpose.msra.mxu0 0.0
    %87 = vmatprep.subr.mxu0 0.0
    %88 = vmatpush1.xpose.msra.mxu0 0.0
    %89 = vmatprep.subr.mxu0 0.0
    %90 = vmatpush1.xpose.msra.mxu0 0.0
    %91 = vmatprep.subr.mxu0 0.0
    %92 = vmatpush1.xpose.msra.mxu0 0.0
    %93 = vmatprep.subr.mxu0 0.0
    %94 = vmatpush1.xpose.msra.mxu0 0.0
    %95 = vmatprep.subr.mxu0 0.0
    %96 = vmatpush1.xpose.msra.mxu0 0.0
    %97 = vmatprep.subr.mxu0 0.0
    %98 = vmatpush1.xpose.msra.mxu0 0.0
    %99 = vmatprep.subr.mxu0 0.0
    %100 = vmatpush1.xpose.msra.mxu0 0.0
    %101 = vmatprep.subr.mxu0 0.0
    %102 = vmatpush1.xpose.msra.mxu0 0.0
    %103 = vmatprep.subr.mxu0 0.0
    %104 = vmatpush1.xpose.msra.mxu0 0.0
    %105 = vmatprep.subr.mxu0 0.0
    %106 = vmatpush1.xpose.msra.mxu0 0.0
    %107 = vmatprep.subr.mxu0 0.0
    %108 = vmatpush1.xpose.msra.mxu0 0.0
    %109 = vmatprep.subr.mxu0 0.0
    %110 = vmatpush1.xpose.msra.mxu0 0.0
    %111 = vmatprep.subr.mxu0 0.0
    %112 = vmatpush1.xpose.msra.mxu0 0.0
    %113 = vmatprep.subr.mxu0 0.0
    %114 = vmatpush1.xpose.msra.mxu0 0.0
    %115 = vmatprep.subr.mxu0 0.0
    %116 = vmatpush1.xpose.msra.mxu0 0.0
    %117 = vmatprep.subr.mxu0 0.0
    %118 = vmatpush1.xpose.msra.mxu0 0.0
    %119 = vmatprep.subr.mxu0 0.0
    %120 = vmatpush1.xpose.msra.mxu0 0.0
    %121 = vmatprep.subr.mxu0 0.0
    %122 = vmatpush1.xpose.msra.mxu0 0.0
    %123 = vmatprep.subr.mxu0 0.0
    %124 = vmatpush1.xpose.msra.mxu0 0.0
    %125 = vmatprep.subr.mxu0 0.0
    %126 = vmatpush1.xpose.msra.mxu0 0.0
    %127 = vmatprep.subr.mxu0 0.0
    %128 = vmatpush1.xpose.msra.mxu0 0.0
    %129 = vmatprep.mubr.f32.mxu0 0.0
    %130 = vmatmul.mubr.f32.gmra.mrb[0].mxu0 %v60
    %v131 = vpop.f32.mrb[0].mxu0
    %v132 = vadd.f32 0.0, %v131
    %v133 = vpop.f32.mrb[0].mxu0
    %134 = vdwg.mxu0
    %v135 = vmul.f32 %v132, 14.285714
    %vm136 = vcmask 64512
    %v137 = vsel %vm136, %v135, -inf
    %138 = vmax.xlane.f32.xlu0 %v137
    %v139 = vpop.xlane.xlu0 %138
    %v140 = vsub.f32 %v135, %v139
    %v141 = vmul.f32 %v140, 1.442695
    %v142 = vpow.pop %v141
    %v143 = vsel %vm136, %v142, 0.0
    %144 = vadd.xlane.f32.xlu0 %v143
    %v145 = vpop.xlane.xlu0 %144
    %v146 = vlog2.pop %v145
    %v147 = vmul.f32 %v146, 0.6931472
    %v148 = vadd.f32 %v139, %v147
    %v149 = vsub.f32 %v135, %v148
    %v150 = vld [vmem:[#allocation8] sm:$0xff]
    %s151 = sld [smem:[#allocation2]]
    %v152 = vmul.f32 %v150, %v149
    %v153 = vsel %vm136, %v152, 0.0
    %154 = vadd.xlane.f32.xlu0 %v153
    %v155 = vpop.xlane.xlu0 %154
    %v156 = vrot.slane %v155, 4
    %v157 = vadd.f32 %v155, %v156
    %v158 = vrot.slane %v157, 2
    %v159 = vadd.f32 %v157, %v158
    %v160 = vrot.slane %v159, 1
    %v161 = vadd.f32 %v159, %v160
    %s162 = vtos %v161
    %s163 = ssub.f32 0.0, %s162
    %s164 = sadd.f32 %s151, %s163
    %s165 = scalar_lea.smem [#allocation2], 0
    %166 = sst [smem:[%s165]] %s164
    // Predicated region
    $region30: #{tpu_custom_call.1} parent=1 // pred_check
      %p167 = pneg %p50
    $region31: #{tpu_custom_call.1} parent=1 // pred_check_branch
      %169 = sbr.rel (%p167) target = $region33
    $region32: #{tpu_custom_call.1} parent=1 // pred_region
      %s170 = sld [smem:[#allocation2]]
      %s171 = smul.f32 %s170, 0.125
      %s172 = scalar_lea.smem [#allocation9], 0
      %173 = sst [smem:[%s172]] %s171
    $region33: #{tpu_custom_call.1} parent=1 // pred_fallthru
      _
    // Predicated region
    $region34: #{tpu_custom_call.1} parent=1 // pred_check
      _
    $region35: #{tpu_custom_call.1} parent=1 // pred_check_branch
      %175 = sbr.rel (0) target = $region37
    $region36: #{tpu_custom_call.1} parent=1 // pred_region
      %s177 = ssub.s32 16, 16
      %178 = vsyncadd [#allocation5], %s177
      %181 = dma.smem_to_hbm [#allocation9], 16, %s3, [#allocation5]
    $region37: #{tpu_custom_call.1} parent=1 // pred_fallthru
      _
    // Predicated region
    $region38: #{tpu_custom_call.1} parent=1 // pred_check
      _
    $region39: #{tpu_custom_call.1} parent=1 // pred_check_branch
      %183 = sbr.rel (0) target = $region41
    $region40: #{tpu_custom_call.1} parent=1 // pred_region
      %184 = dma.done [#allocation5], 16
    $region41: #{tpu_custom_call.1} parent=1 // pred_fallthru
      _
    %185 = sfence
    %186 = vsyncpa [#allocation4], 1
    %187 = vsyncpa [#allocation7], 1
    %188 = vsyncpa [#allocation5], 1

</llo_original>
